<compile_context>
chip_gen: v6e
topology: v6e:2x2x1
jax: 0.10.0
libtpu: 0.0.40
codegen_flags: <defaults>
</compile_context>

<pallas_src>
from functools import partial

import jax
import jax.numpy as jnp
from jax.experimental import pallas as pl
from jax.experimental.pallas import tpu as pltpu


_VMEM = pl.BlockSpec(memory_space=pltpu.MemorySpace.VMEM)


def _forward_kernel(idx, x_ref, w_ref, o_ref):
    # Linear(1, 1, bias=False): a 1x1 contraction == one VPU multiply in one
    # vreg. `idx` is a static Python int (choice - 1) baked in via closure, so
    # the weight row is selected with a static first-axis load — no slice op
    # or HBM intermediate outside the kernel.
    o_ref[...] = x_ref[...] * w_ref[idx]


def _forward_loss_kernel(idx, x_ref, w_ref, t_ref, out_ref):
    # Fused forward + loss, packed into ONE (1, 2) output tile: [o, (o-t)^2].
    # Everything stays in VMEM/vregs; one output buffer -> one writeback.
    o = x_ref[...] * w_ref[idx]          # (1, 1)
    d = o - t_ref[...]
    out_ref[:, 0:1] = o
    out_ref[:, 1:2] = d * d


@partial(jax.jit, static_argnums=0)
def _forward_impl(choice: int, x: jax.Array, stacked_w: jax.Array) -> jax.Array:
    out = pl.pallas_call(
        partial(_forward_kernel, choice - 1),
        out_shape=jax.ShapeDtypeStruct((1, 1), jnp.float32),
        in_specs=[_VMEM, _VMEM],
        out_specs=_VMEM,
    )(x, stacked_w)
    return out.reshape(1)


@partial(jax.jit, static_argnums=0)
def _forward_loss_impl(choice: int, x: jax.Array, stacked_w: jax.Array,
                       target_2d: jax.Array):
    packed = pl.pallas_call(
        partial(_forward_loss_kernel, choice - 1),
        out_shape=jax.ShapeDtypeStruct((1, 2), jnp.float32),
        in_specs=[_VMEM, _VMEM, _VMEM],
        out_specs=_VMEM,
    )(x, stacked_w, target_2d)
    return packed[0, 0:1], packed[0, 1:2]


def conditional_forward(choice: int, x: jax.Array, stacked_w: jax.Array) -> jax.Array:
    """Mirrors MinimalConditionalModel.forward.

    choice    : Python int in {1, 2, 3}  (Python-level branch, as in PyTorch)
    x         : (1, 1) float32  -- the Tensor([1]) input
    stacked_w : (3, 1, 1) float32 -- [choice1.weight, choice2.weight, choice3.weight]
    returns   : (1,) float32
    """
    if choice not in (1, 2, 3):
        raise Exception('Invalid input:', choice)
    return _forward_impl(choice, x, stacked_w)


def forward_and_loss(choice: int, x: jax.Array, stacked_w: jax.Array,
                     target_2d: jax.Array):
    """Fused forward + loss in one gridless pallas_call.

    target_2d must already be float32 of shape (1, 1) (no per-call
    reshape/astype feeds the kernel).  Returns (output (1,), loss (1,)).
    """
    if choice not in (1, 2, 3):
        raise Exception('Invalid input:', choice)
    if target_2d.shape != (1, 1) or target_2d.dtype != jnp.float32:
        raise ValueError('target must be float32 with shape (1, 1)')
    return _forward_loss_impl(choice, x, stacked_w, target_2d)


@jax.jit
def loss(output: jax.Array, target: jax.Array) -> jax.Array:
    """Mirrors MinimalConditionalModel.loss: (output - target)^2 elementwise.

    Plain jnp under jit — a separate Pallas call for one element is pure
    launch overhead; the Pallas-side loss lives in the fused kernel above.
    """
    d = output - target
    return d * d


if __name__ == "__main__":
    key = jax.random.PRNGKey(0)
    k_choice, k_target = jax.random.split(key)

    # Parameters: choice1/2/3 weights, all constant-initialized to 0,
    # stacked along a leading "choice" axis.   shape (3, 1, 1)
    stacked_w = jnp.zeros((3, 1, 1), dtype=jnp.float32)

    # The forward input to the selected Linear is always Tensor([1]).
    x = jnp.ones((1, 1), dtype=jnp.float32)

    # Deterministic "example input": an int in {1, 2, 3}; target is f32 (1,1)
    # at the API boundary (no per-call reshape/astype).
    choice = int(jax.random.randint(k_choice, (), 1, 4))
    target = jax.random.normal(k_target, (1, 1), dtype=jnp.float32)

    # Forward-only Pallas path (exercise all three branches).
    for c in (choice, 1, 2, 3):
        out = jax.block_until_ready(conditional_forward(c, x, stacked_w))
        assert out.shape == (1,)
        assert float(out[0]) == 0.0  # zero-initialized weights -> zero output

    # Fused forward + loss (single pallas_call, packed (1,2) output).
    out, l = forward_and_loss(choice, x, stacked_w, target)
    out = jax.block_until_ready(out)
    l = jax.block_until_ready(l)
    assert out.shape == (1,) and l.shape == (1,)
    expected = float((out[0] - target[0, 0]) ** 2)
    assert abs(float(l[0]) - expected) < 1e-6

    # Standalone (plain-jnp) loss matches the fused result.
    l2 = jax.block_until_ready(loss(out, target.reshape(1)))
    assert l2.shape == (1,)
    assert abs(float(l2[0]) - expected) < 1e-6

    print("KERNEL_OK")
</pallas_src>

<mosaic_0001>
module attributes {stable_mosaic.version = 11 : i64} {
  func.func @_forward_kernel(%arg0: memref<1x1xf32, #tpu.memory_space<vmem>>, %arg1: memref<3x1x1xf32, #tpu.memory_space<vmem>>, %arg2: memref<1x1xf32, #tpu.memory_space<vmem>>) attributes {dimension_semantics = [], scalar_prefetch = 0 : i64, scratch_operands = 0 : i64, tpu.core_type = #tpu.core_type<tc>} {
    %c0 = arith.constant 0 : index
    %c0_0 = arith.constant 0 : index
    %0 = vector.load %arg0[%c0, %c0_0] : memref<1x1xf32, #tpu.memory_space<vmem>>, vector<1x1xf32>
    %c1 = arith.constant 1 : index
    %c0_1 = arith.constant 0 : index
    %c0_2 = arith.constant 0 : index
    %1 = vector.load %arg1[%c1, %c0_1, %c0_2] : memref<3x1x1xf32, #tpu.memory_space<vmem>>, vector<1x1x1xf32>
    %2 = vector.shape_cast %1 : vector<1x1x1xf32> to vector<1x1xf32>
    %3 = arith.mulf %0, %2 : vector<1x1xf32>
    %c0_3 = arith.constant 0 : index
    %c0_4 = arith.constant 0 : index
    %4 = vector.load %arg2[%c0_3, %c0_4] : memref<1x1xf32, #tpu.memory_space<vmem>>, vector<1x1xf32>
    tpu.vector_store %arg2[%c0_3, %c0_4], %3 {strides = array<i32>} : memref<1x1xf32, #tpu.memory_space<vmem>>, vector<1x1xf32>,
    return
  }
}

</mosaic_0001>

<llo_original>
// kernel: _forward_impl.1
$region0: #{_forward_impl.1}
  #allocation0 [shape = 'u32[]', space=smem, size = 0x4, offset = 0x4, fixed_abs, tag = 'smem constant byte address 0x4 - core index']
  #allocation1 [shape = 'u32[144,128]{1,0:T(1,128)}', space=vmem, size = 0x12000, scoped, tag = 'internal scratch']
  #allocation2 [shape = 'f32[1,1]{1,0:T(1,128)S(1)}', space=vmem, size = 0x200, scoped, tag = 'scoped memory for _forward_impl.1']
  %s0 = inlined_call_operand.<no memory space> [shape: f32[1,1], index: 0, kind: input, shape index: {}]
  %s1 = inlined_call_operand.vmem [shape: f32[3,1,1], index: 1, kind: input, shape index: {}]
  %s2 = inlined_call_operand.hbm [shape: f32[1,1], index: 2, kind: output, shape index: {}]
  %s3 = sld [smem:[#allocation0]]
  $region18: #{_forward_impl.1} parent=0
    _
  %s5 = ssub.s32 1, %s3
  %s6 = scalar_select 0, %s5, %s3
  %v7 = vstv %s0
  %8 = vst [vmem:[#allocation2] sm:$0x1] %v7
  $region1: #{_forward_impl.1} parent=0
    #allocation3 [shape = 'u8[512]{0}', space=vmem, size = 0x400, scoped, tag = 'output window, operand 0, single buffered']
    #allocation4 [shape = 's32[1]{0}', space=sflag, size = 0x4, scoped, tag = 'scoped memory for _forward_impl.1']
    %9 = vsyncpa [#allocation4], 0
    // Predicated region
    $region2: #{_forward_impl.1} parent=1 // pred_check
      _
    $region3: #{_forward_impl.1} parent=1 // pred_check_branch
      %11 = sbr.rel (0) target = $region5
    $region4: #{_forward_impl.1} parent=1 // pred_region
      _
    $region5: #{_forward_impl.1} parent=1 // pred_fallthru
      _
    // Predicated region
    $region6: #{_forward_impl.1} parent=1 // pred_check
      _
    $region7: #{_forward_impl.1} parent=1 // pred_check_branch
      %13 = sbr.rel (0) target = $region9
    $region8: #{_forward_impl.1} parent=1 // pred_region
      _
    $region9: #{_forward_impl.1} parent=1 // pred_fallthru
      _
    %v14 = vld [vmem:[#allocation2] sm:$0x1]
    %s15 = scalar_lea.vmem %s1, 1
    %v16 = vld [vmem:[%s15] sm:$0x1]
    %v17 = vmul.f32 %v14, %v16
    %vm18 = vcmask 0
    %19 = vst.msk [vmem:[#allocation3] sm:$0x1] %vm18, %v17
    // Predicated region
    $region10: #{_forward_impl.1} parent=1 // pred_check
      _
    $region11: #{_forward_impl.1} parent=1 // pred_check_branch
      %21 = sbr.rel (0) target = $region13
    $region12: #{_forward_impl.1} parent=1 // pred_region
      %s23 = ssub.s32 16, 16
      %24 = vsyncadd [#allocation4], %s23
      %s26 = sshll.u32 [#allocation3], 4
      %s27 = int_to_ptr.vmem [resolvable:$true] %s26
      %29 = dma.vmem_to_hbm [thread:$0]  %s27, 16, %s2, [#allocation4]
    $region13: #{_forward_impl.1} parent=1 // pred_fallthru
      _
    // Predicated region
    $region14: #{_forward_impl.1} parent=1 // pred_check
      _
    $region15: #{_forward_impl.1} parent=1 // pred_check_branch
      %31 = sbr.rel (0) target = $region17
    $region16: #{_forward_impl.1} parent=1 // pred_region
      %32 = dma.done [#allocation4], 16
    $region17: #{_forward_impl.1} parent=1 // pred_fallthru
      _
    %33 = vsyncpa [#allocation4], 1

</llo_original>
